<compile_context>
chip_gen: v5e
topology: v5e:2x2
jax: 0.10.0
libtpu: 0.0.40
codegen_flags: <defaults>
</compile_context>

<pallas_src>
import jax
import jax.numpy as jnp
from jax.experimental import pallas as pl
from jax.experimental.pallas import tpu as pltpu


def _vmem_capacity_bytes():
    try:
        return int(pltpu.get_tpu_info().vmem_capacity_bytes)
    except Exception:
        return 64 * 1024 * 1024        # conservative (v7x-sized) default


def _pick_tile_m(m_sp, k, c_out, n_batch, vmem_cap):
    """Pick tile_m (lane width of the output block) such that it
       * divides the per-sample spatial size m_sp,
       * is a multiple of 128 (unmasked, lane-dense stores),
       * fits a conservative VMEM budget (double-buffered x / out tiles),
       * leaves >= 2 total grid steps when possible (v7x's two TensorCores).
    Returns (tile_m, m_pad); m_pad > m_sp only on a rare ragged fallback."""
    # bytes per unit of tile_m: 2 bf16 x buffers + 2 f32 out buffers + live f32 acc
    per_m = 2 * (2 * k) + 3 * (4 * c_out)
    const_bytes = k * c_out * 2 + 1024                  # weight (bf16) + bias
    budget = max(int(0.55 * vmem_cap) - const_bytes, per_m * 128)
    cap = max(128, min(budget // per_m, 32768))
    if n_batch == 1:
        cap = min(cap, max(128, m_sp // 2))             # keep >= 2 grid steps
    if m_sp % 128 == 0:
        t = (cap // 128) * 128
        while t >= 128:                                 # <= 256 iterations
            if m_sp % t == 0:
                return int(t), int(m_sp)                # no padding
            t -= 128
    if m_sp <= cap:
        return int(m_sp), int(m_sp)                     # full-extent block (legal)
    # TODO(synk): rare ragged case (m_sp not a multiple of 128 and too big for one
    # block): pad M up -- costs one extra copy of the patch matrix.
    t = (cap // 128) * 128
    m_pad = ((m_sp + t - 1) // t) * t
    return int(t), int(m_pad)


def _down_conv_kernel(x_ref, w_ref, b_ref, o_ref):
    # x_ref: (1, K, tile_m) bf16 ; w_ref: (C_out, K) bf16 ; b_ref: (C_out, 1) f32
    acc = jnp.dot(w_ref[...], x_ref[0], preferred_element_type=jnp.float32)
    acc = acc + b_ref[...]                       # bias broadcast over lanes (f32)
    o_ref[0] = jnp.maximum(acc, 0.0).astype(o_ref.dtype)


def downsampling_conv_block(x, weight, bias, stride=2, tile_m=None):
    """Forward pass of DownsamplingConvBlock (normalization='none').

    x:      (N, C_in, D, H, W)   float32, NCDHW (PyTorch layout)
    weight: (C_out, C_in, s, s, s)
    bias:   (C_out,)
    returns (N, C_out, D//s, H//s, W//s) float32
    """
    n, c_in, d, h, w = x.shape
    c_out = weight.shape[0]
    s = stride
    assert d % s == 0 and h % s == 0 and w % s == 0
    do, ho, wo = d // s, h // s, w // s

    m_sp = do * ho * wo                     # per-sample output spatial size
    k = c_in * s * s * s                    # contraction size over (ci, kd, kh, kw)

    vmem_cap = _vmem_capacity_bytes()
    if tile_m is None:
        tile_m, m_pad = _pick_tile_m(m_sp, k, c_out, n, vmem_cap)
    else:
        assert m_sp % tile_m == 0 and (tile_m % 128 == 0 or tile_m == m_sp)
        m_pad = m_sp

    # --- glue: the single XLA relayout (im2col transposed, fused with bf16 cast).
    xb = x.astype(jnp.bfloat16)
    xp = xb.reshape(n, c_in, do, s, ho, s, wo, s)
    xp = xp.transpose(0, 1, 3, 5, 7, 2, 4, 6)      # (N, ci, kd, kh, kw, do, ho, wo)
    x_t = xp.reshape(n, k, m_sp)                   # X^T per sample: (N, K, M_sp)
    if m_pad != m_sp:
        x_t = jnp.pad(x_t, ((0, 0), (0, 0), (0, m_pad - m_sp)))

    w2 = weight.reshape(c_out, k).astype(jnp.bfloat16)      # (C_out, K)
    b2 = bias.reshape(c_out, 1).astype(jnp.float32)         # (C_out, 1)

    grid = (n, m_pad // tile_m)

    # explicit VMEM limit from the actual allocation (+ headroom for Mosaic)
    x_tile_b = k * tile_m * 2
    out_tile_b = c_out * tile_m * 4
    need = 2 * x_tile_b + 3 * out_tile_b + c_out * k * 2 + 4096
    vmem_limit = int(min(vmem_cap, max(need * 3 // 2, 16 * 1024 * 1024)))

    out3 = pl.pallas_call(
        _down_conv_kernel,
        out_shape=jax.ShapeDtypeStruct((n, c_out, m_pad), x.dtype),
        grid=grid,
        in_specs=[
            pl.BlockSpec((1, k, tile_m), lambda nb, mb: (nb, 0, mb)),   # X^T tile
            pl.BlockSpec((c_out, k), lambda nb, mb: (0, 0)),            # weight
            pl.BlockSpec((c_out, 1), lambda nb, mb: (0, 0)),            # bias
        ],
        out_specs=pl.BlockSpec((1, c_out, tile_m), lambda nb, mb: (nb, 0, mb)),
        compiler_params=pltpu.CompilerParams(
            dimension_semantics=("parallel", "parallel"),
            vmem_limit_bytes=vmem_limit,
        ),
        cost_estimate=pl.CostEstimate(
            flops=2 * n * m_pad * k * c_out,
            transcendentals=0,
            bytes_accessed=(n * k * m_pad * 2 + c_out * k * 2 + c_out * 4
                            + n * c_out * m_pad * 4),
        ),
    )(x_t, w2, b2)

    if m_pad != m_sp:
        out3 = out3[:, :, :m_sp]
    # free contiguous reshape straight back to NCDHW -- no output transpose pass
    return out3.reshape(n, c_out, do, ho, wo)


def _reference(x, weight, bias, stride=2):
    """Pure-JAX f32 reference (lax conv) for correctness checking."""
    out = jax.lax.conv_general_dilated(
        x, weight,
        window_strides=(stride, stride, stride),
        padding="VALID",
        dimension_numbers=("NCDHW", "OIDHW", "NCDHW"),
    )
    out = out + bias.reshape(1, -1, 1, 1, 1)
    return jnp.maximum(out, 0.0)


if __name__ == "__main__":
    key = jax.random.PRNGKey(0)
    kx, kwt, kb = jax.random.split(key, 3)

    # small shapes consistent with the module (block_one_dw-like, scaled down)
    N, C_IN, C_OUT, S = 2, 4, 8, 2
    D = H = W = 16

    x = jax.random.normal(kx, (N, C_IN, D, H, W), dtype=jnp.float32)
    fan_in = C_IN * S * S * S
    bound = 1.0 / (fan_in ** 0.5)
    weight = jax.random.uniform(kwt, (C_OUT, C_IN, S, S, S),
                                dtype=jnp.float32, minval=-bound, maxval=bound)
    bias = jax.random.uniform(kb, (C_OUT,), dtype=jnp.float32,
                              minval=-bound, maxval=bound)

    ref = jax.block_until_ready(_reference(x, weight, bias, stride=S))

    # (1) forced small tile -> multi-step pipelined grid: grid = (2, 4)
    out_tiled = jax.block_until_ready(
        downsampling_conv_block(x, weight, bias, stride=S, tile_m=128))
    # (2) auto-picked tile (what real VNet shapes would use): grid = (2, 1)
    out_auto = jax.block_until_ready(
        downsampling_conv_block(x, weight, bias, stride=S))

    assert out_tiled.shape == (N, C_OUT, D // S, H // S, W // S)
    assert out_auto.shape == out_tiled.shape
    # bf16 MXU inputs with f32 accumulation -> tolerance loosened vs f32 conv
    assert jnp.allclose(out_tiled, ref, atol=2e-2, rtol=2e-2), \
        float(jnp.max(jnp.abs(out_tiled - ref)))
    assert jnp.allclose(out_auto, ref, atol=2e-2, rtol=2e-2), \
        float(jnp.max(jnp.abs(out_auto - ref)))

    print("KERNEL_OK")
</pallas_src>

<mosaic_0001>
module attributes {stable_mosaic.version = 11 : i64} {
  func.func @_down_conv_kernel(%arg0: i32, %arg1: i32, %arg2: memref<1x32x128xbf16, #tpu.memory_space<vmem>>, %arg3: memref<8x32xbf16, #tpu.memory_space<vmem>>, %arg4: memref<8x1xf32, #tpu.memory_space<vmem>>, %arg5: memref<1x8x128xf32, #tpu.memory_space<vmem>>) attributes {dimension_semantics = [#tpu.dimension_semantics<parallel>, #tpu.dimension_semantics<parallel>], iteration_bounds = array<i64: 2, 4>, scalar_prefetch = 0 : i64, scratch_operands = 0 : i64, tpu.core_type = #tpu.core_type<tc>, window_params = [{transform_indices = @transform_0, window_bounds = array<i64: 1, 32, 128>}, {pipeline_mode = #tpu.pipeline_mode<synchronous>, transform_indices = @transform_1, window_bounds = array<i64: 8, 32>}, {pipeline_mode = #tpu.pipeline_mode<synchronous>, transform_indices = @transform_2, window_bounds = array<i64: 8, 1>}, {transform_indices = @transform_3, window_bounds = array<i64: 1, 8, 128>}]} {
    %c0 = arith.constant 0 : index
    %c0_0 = arith.constant 0 : index
    %0 = vector.load %arg3[%c0, %c0_0] : memref<8x32xbf16, #tpu.memory_space<vmem>>, vector<8x32xbf16>
    %c0_1 = arith.constant 0 : index
    %c0_2 = arith.constant 0 : index
    %c0_3 = arith.constant 0 : index
    %1 = vector.load %arg2[%c0_1, %c0_2, %c0_3] : memref<1x32x128xbf16, #tpu.memory_space<vmem>>, vector<1x32x128xbf16>
    %2 = vector.shape_cast %1 : vector<1x32x128xbf16> to vector<32x128xbf16>
    %cst = arith.constant dense<0.000000e+00> : vector<8x128xf32>
    %3 = tpu.matmul %0, %2, %cst {dimension_numbers = #tpu.dot_dimension_numbers<[1], [0], [0], [1], [0, 0, 1, 1], [], []>} : vector<8x32xbf16>, vector<32x128xbf16>, vector<8x128xf32> -> vector<8x128xf32>
    %c0_4 = arith.constant 0 : index
    %c0_5 = arith.constant 0 : index
    %4 = vector.load %arg4[%c0_4, %c0_5] : memref<8x1xf32, #tpu.memory_space<vmem>>, vector<8x1xf32>
    %5 = vector.broadcast %4 : vector<8x1xf32> to vector<8x128xf32>
    %6 = arith.addf %3, %5 : vector<8x128xf32>
    %cst_6 = arith.constant 0.000000e+00 : f32
    %7 = vector.broadcast %cst_6 : f32 to vector<8x128xf32>
    %8 = arith.maximumf %6, %7 : vector<8x128xf32>
    %c0_7 = arith.constant 0 : index
    %c0_8 = arith.constant 0 : index
    %c0_9 = arith.constant 0 : index
    %9 = vector.load %arg5[%c0_7, %c0_8, %c0_9] : memref<1x8x128xf32, #tpu.memory_space<vmem>>, vector<1x8x128xf32>
    %10 = vector.shape_cast %9 : vector<1x8x128xf32> to vector<8x128xf32>
    %11 = vector.shape_cast %8 : vector<8x128xf32> to vector<1x8x128xf32>
    tpu.vector_store %arg5[%c0_7, %c0_8, %c0_9], %11 {strides = array<i32>} : memref<1x8x128xf32, #tpu.memory_space<vmem>>, vector<1x8x128xf32>,
    return
  }
  func.func @transform_0(%arg0: i32, %arg1: i32) -> (i32, i32, i32) {
    %c0_i32 = arith.constant 0 : i32
    %c0_i32_0 = arith.constant 0 : i32
    return %arg0, %c0_i32, %arg1 : i32, i32, i32
  }
  func.func @transform_1(%arg0: i32, %arg1: i32) -> (i32, i32) {
    %c0_i32 = arith.constant 0 : i32
    %c0_i32_0 = arith.constant 0 : i32
    %c0_i32_1 = arith.constant 0 : i32
    return %c0_i32, %c0_i32_0 : i32, i32
  }
  func.func @transform_2(%arg0: i32, %arg1: i32) -> (i32, i32) {
    %c0_i32 = arith.constant 0 : i32
    %c0_i32_0 = arith.constant 0 : i32
    %c0_i32_1 = arith.constant 0 : i32
    return %c0_i32, %c0_i32_0 : i32, i32
  }
  func.func @transform_3(%arg0: i32, %arg1: i32) -> (i32, i32, i32) {
    %c0_i32 = arith.constant 0 : i32
    %c0_i32_0 = arith.constant 0 : i32
    return %arg0, %c0_i32, %arg1 : i32, i32, i32
  }
}

</mosaic_0001>

<llo_original>
// kernel: tpu_custom_call.1
$region0: #{tpu_custom_call.1}
  #allocation0 [shape = 'u32[]', space=smem, size = 0x4, offset = 0x4, fixed_abs, tag = 'smem constant byte address 0x4 - core index']
  #allocation1 [shape = 'u32[72,128]{1,0:T(1,128)}', space=vmem, size = 0x9000, scoped, tag = 'internal scratch']
  %s0 = inlined_call_operand.hbm [shape: bf16[2,32,512], index: 0, kind: input, shape index: {}]
  %s1 = inlined_call_operand.vmem [shape: bf16[8,32], index: 1, kind: input, shape index: {}]
  %s2 = inlined_call_operand.vmem [shape: f32[8,1], index: 2, kind: input, shape index: {}]
  %s3 = inlined_call_operand.hbm [shape: f32[2,8,512], index: 3, kind: output, shape index: {}]
  %s4 = sld [smem:[#allocation0]]
  $region49: #{tpu_custom_call.1} parent=0
    _
  %s6 = ssub.s32 1, %s4
  %s7 = scalar_select 0, %s6, %s4
  $region1: #{tpu_custom_call.1} parent=0
    #allocation2 [shape = 'u8[16384]{0}', space=vmem, size = 0x4000, scoped, tag = 'input window, operand 0']
    #allocation3 [shape = 's32[2]{0}', space=sflag, size = 0x8, scoped, tag = 'scoped memory for tpu_custom_call.1']
    #allocation4 [shape = 's32[2]{0}', space=sflag, size = 0x8, scoped, tag = 'scoped memory for tpu_custom_call.1']
    #allocation5 [shape = 'u8[8192]{0}', space=vmem, size = 0x2000, scoped, tag = 'output window, operand 0']
    %8 = vsyncpa [#allocation3], 0
    %s9 = scalar_lea.sflag [#allocation3], 1
    %10 = vsyncpa %s9, 0
    %11 = vsyncpa [#allocation4], 0
    %s12 = scalar_lea.sflag [#allocation4], 1
    %13 = vsyncpa %s12, 0
    loop: start=0, step=1, limit=10
    $region2: #{tpu_custom_call.1} parent=1 // loop_pre_header
      _
    $region3: #{tpu_custom_call.1} parent=1 // loop_header
      %s15 = sphi 0, %s19
      %p16 = scmp.ge.s32.totalorder %s15, 10
      %s22 = sphi 0, %s34
      %s23 = sphi 0, %s30
      %s24 = sphi 0, %s22
      %s25 = sphi 0, %s23
      %s26 = sphi 0, %s24
      %s27 = sphi 0, %s25
      %s39 = sphi 0, %s41
      %s42 = sphi 0, %s39
      %s43 = sphi 0, %s42
      %s59 = sphi 0, %s43
      %s63 = sphi 0, %s63
      %s65 = sphi 0, %s63
      %s66 = sphi 0, %s65
      %s80 = sphi 0, %s66
      %s84 = sphi 0, %s84
      %s86 = sphi 0, %s84
      %s87 = sphi 0, %s86
      %s101 = sphi 0, %s87
      %s109 = sphi 0, %s111
      %s112 = sphi 0, %s109
      %s113 = sphi 0, %s112
      %s129 = sphi 0, %s113
    $region4: #{tpu_custom_call.1} parent=1 // loop_header_branch
      %18 = sbr.rel (%p16) target = $region8
    $region5: #{tpu_custom_call.1} parent=1 // loop_body
      %s20 = ssub.s32 %s15, 1
      %s21 = ssub.s32 %s15, 2
      %s28 = sadd.s32 1, %s23
      %p29 = scmp.ge.s32.totalorder %s28, 4
      %s30 = scalar_select %p29, 0, %s28
      %s31 = sadd.s32 1, %s22
      %s32 = scalar_select %p29, %s31, %s22
      %p33 = scmp.ge.s32.totalorder %s32, 2
      %s34 = scalar_select %p33, 0, %s32
      %s35 = ssub.s32 %s22, %s34
      %s36 = ssub.s32 %s23, %s30
      %s37 = sor.u32 %s35, %s36
      %p38 = scmp.eq.s32.totalorder %s37, 0
      %s40 = sadd.s32 %s39, 1
      %s41 = scalar_select %p38, %s39, %s40
      %p44 = pneg %p38
      %p45 = scmp.eq.s32.totalorder %s15, 7
      %p46 = por %p44, %p45
      %p47 = scmp.ne.s32.totalorder %s39, %s42
      %p48 = scmp.eq.s32.totalorder %s15, 0
      %p49 = por %p47, %p48
      %p50 = scmp.ne.s32.totalorder %s39, %s42
      %p51 = scmp.eq.s32.totalorder %s20, 7
      %p52 = por %p50, %p51
      %p53 = scmp.ne.s32.totalorder %s42, %s43
      %p54 = scmp.eq.s32.totalorder %s20, 0
      %p55 = por %p53, %p54
      %p56 = scmp.ne.s32.totalorder %s42, %s43
      %p57 = scmp.eq.s32.totalorder %s21, 7
      %p58 = por %p56, %p57
      %p60 = scmp.ne.s32.totalorder %s43, %s59
      %p61 = scmp.eq.s32.totalorder %s21, 0
      %p62 = por %p60, %p61
      %s64 = sadd.s32 %s63, 1
      %p67 = scmp.eq.s32.totalorder %s15, 7
      %p68 = scmp.ne.s32.totalorder %s63, %s65
      %p69 = scmp.eq.s32.totalorder %s15, 0
      %p70 = por %p68, %p69
      %p71 = scmp.ne.s32.totalorder %s63, %s65
      %p72 = scmp.eq.s32.totalorder %s20, 7
      %p73 = por %p71, %p72
      %p74 = scmp.ne.s32.totalorder %s65, %s66
      %p75 = scmp.eq.s32.totalorder %s20, 0
      %p76 = por %p74, %p75
      %p77 = scmp.ne.s32.totalorder %s65, %s66
      %p78 = scmp.eq.s32.totalorder %s21, 7
      %p79 = por %p77, %p78
      %p81 = scmp.ne.s32.totalorder %s66, %s80
      %p82 = scmp.eq.s32.totalorder %s21, 0
      %p83 = por %p81, %p82
      %s85 = sadd.s32 %s84, 1
      %p88 = scmp.eq.s32.totalorder %s15, 7
      %p89 = scmp.ne.s32.totalorder %s84, %s86
      %p90 = scmp.eq.s32.totalorder %s15, 0
      %p91 = por %p89, %p90
      %p92 = scmp.ne.s32.totalorder %s84, %s86
      %p93 = scmp.eq.s32.totalorder %s20, 7
      %p94 = por %p92, %p93
      %p95 = scmp.ne.s32.totalorder %s86, %s87
      %p96 = scmp.eq.s32.totalorder %s20, 0
      %p97 = por %p95, %p96
      %p98 = scmp.ne.s32.totalorder %s86, %s87
      %p99 = scmp.eq.s32.totalorder %s21, 7
      %p100 = por %p98, %p99
      %p102 = scmp.ne.s32.totalorder %s87, %s101
      %p103 = scmp.eq.s32.totalorder %s21, 0
      %p104 = por %p102, %p103
      %s105 = ssub.s32 %s22, %s34
      %s106 = ssub.s32 %s23, %s30
      %s107 = sor.u32 %s105, %s106
      %p108 = scmp.eq.s32.totalorder %s107, 0
      %s110 = sadd.s32 %s109, 1
      %s111 = scalar_select %p108, %s109, %s110
      %p114 = pneg %p108
      %p115 = scmp.eq.s32.totalorder %s15, 7
      %p116 = por %p114, %p115
      %p117 = scmp.ne.s32.totalorder %s109, %s112
      %p118 = scmp.eq.s32.totalorder %s15, 0
      %p119 = por %p117, %p118
      %p120 = scmp.ne.s32.totalorder %s109, %s112
      %p121 = scmp.eq.s32.totalorder %s20, 7
      %p122 = por %p120, %p121
      %p123 = scmp.ne.s32.totalorder %s112, %s113
      %p124 = scmp.eq.s32.totalorder %s20, 0
      %p125 = por %p123, %p124
      %p126 = scmp.ne.s32.totalorder %s112, %s113
      %p127 = scmp.eq.s32.totalorder %s21, 7
      %p128 = por %p126, %p127
      %p130 = scmp.ne.s32.totalorder %s113, %s129
      %p131 = scmp.eq.s32.totalorder %s21, 0
      %p132 = por %p130, %p131
      %p133 = scmp.le.s32.totalorder 1, %s15
      %p134 = scmp.lt.s32.totalorder %s15, 9
      %p135 = pnand %p133, %p134
      %p136 = pneg %p135
      // Predicated region
      $region9: #{tpu_custom_call.1} parent=5 // pred_check
        _
      $region10: #{tpu_custom_call.1} parent=5 // pred_check_branch
        %138 = sbr.rel (%p135) target = $region12
      $region11: #{tpu_custom_call.1} parent=5 // pred_region
        %s139 = ssub.s32 %s15, 1
        // Predicated region
        $region13: #{tpu_custom_call.1} parent=11 // pred_check
          %p140 = pneg %p76
        $region14: #{tpu_custom_call.1} parent=11 // pred_check_branch
          %142 = sbr.rel (%p140) target = $region16
        $region15: #{tpu_custom_call.1} parent=11 // pred_region
          _
        $region16: #{tpu_custom_call.1} parent=11 // pred_fallthru
          _
        // Predicated region
        $region17: #{tpu_custom_call.1} parent=11 // pred_check
          %p143 = pneg %p97
        $region18: #{tpu_custom_call.1} parent=11 // pred_check_branch
          %145 = sbr.rel (%p143) target = $region20
        $region19: #{tpu_custom_call.1} parent=11 // pred_region
          _
        $region20: #{tpu_custom_call.1} parent=11 // pred_fallthru
          _
      $region12: #{tpu_custom_call.1} parent=5 // pred_fallthru
        _
      %p146 = scmp.lt.s32.totalorder %s15, 8
      // Predicated region
      $region21: #{tpu_custom_call.1} parent=5 // pred_check
        %p147 = pneg %p146
      $region22: #{tpu_custom_call.1} parent=5 // pred_check_branch
        %149 = sbr.rel (%p147) target = $region24
      $region23: #{tpu_custom_call.1} parent=5 // pred_region
        // Predicated region
        $region25: #{tpu_custom_call.1} parent=23 // pred_check
          %p150 = pneg %p49
        $region26: #{tpu_custom_call.1} parent=23 // pred_check_branch
          %152 = sbr.rel (%p150) target = $region28
        $region27: #{tpu_custom_call.1} parent=23 // pred_region
          %s153 = sand.u32 %s39, 1
          %s154 = scalar_lea.sflag [#allocation3], %s153
          %s155 = sand.u32 %s39, 1
          %s156 = smul.addr %s155, 16
          %s157 = scalar_lea.vmem [#allocation2], %s156
          %159 = vsyncadd %s154, 0
          %s160 = smul.addr %s22, 16
          %s161 = sadd.s32 %s23, %s160
          %s162 = smul.addr %s161, 4
          %s163 = scalar_lea.hbm %s0, %s162
          %s164 = sshll.u32 %s163, 4
          %s165 = int_to_ptr.hbm [resolvable:$true] %s164
          %s166 = sshll.u32 %s157, 4
          %s167 = int_to_ptr.vmem [resolvable:$true] %s166
          %172 = dma.hbm_to_vmem [thread:$0]  %s165, 256, %s167, %s154, 256, 64, 4
        $region28: #{tpu_custom_call.1} parent=23 // pred_fallthru
          _
      $region24: #{tpu_custom_call.1} parent=5 // pred_fallthru
        _
      %p173 = scmp.le.s32.totalorder 1, %s15
      %p174 = scmp.lt.s32.totalorder %s15, 9
      %p175 = pnand %p173, %p174
      %p176 = pneg %p175
      // Predicated region
      $region29: #{tpu_custom_call.1} parent=5 // pred_check
        _
      $region30: #{tpu_custom_call.1} parent=5 // pred_check_branch
        %178 = sbr.rel (%p175) target = $region32
      $region31: #{tpu_custom_call.1} parent=5 // pred_region
        %s179 = ssub.s32 %s15, 1
        %s180 = sand.u32 %s42, 1
        %s181 = scalar_lea.sflag [#allocation3], %s180
        %s182 = sand.u32 %s42, 1
        %s183 = smul.addr %s182, 16
        %s184 = scalar_lea.vmem [#allocation2], %s183
        // Predicated region
        $region33: #{tpu_custom_call.1} parent=31 // pred_check
          %p185 = pneg %p55
        $region34: #{tpu_custom_call.1} parent=31 // pred_check_branch
          %187 = sbr.rel (%p185) target = $region36
        $region35: #{tpu_custom_call.1} parent=31 // pred_region
          %189 = dma.done %s181, 256
        $region36: #{tpu_custom_call.1} parent=31 // pred_fallthru
          _
        %s190 = sand.u32 %s42, 1
        %s191 = scalar_lea.sflag [#allocation3], %s190
        %s192 = sand.u32 %s42, 1
        %s193 = smul.addr %s192, 16
        %s194 = scalar_lea.vmem [#allocation2], %s193
        %p195 = pneg %p55
        %p196 = pneg %p52
        %p197 = pneg %p76
        %p198 = pneg %p73
        %p199 = pneg %p97
        %p200 = pneg %p94
        %p201 = pneg %p125
        %p202 = pneg %p122
        %s203 = sand.u32 %s112, 1
        %s204 = scalar_lea.sflag [#allocation4], %s203
        %s205 = sand.u32 %s112, 1
        %s206 = smul.addr %s205, 8
        %s207 = scalar_lea.vmem [#allocation5], %s206
        %v209 = vld [vmem:[%s1] sm:$0xf]
        %v210 = vld [vmem:[%s184] sm:$0xf]
        %v211 = vld [vmem:[%s184 + $0x4] sm:$0xf]
        %v212 = vld [vmem:[%s184 + $0x8] sm:$0xf]
        %v213 = vld [vmem:[%s184 + $0xc] sm:$0xf]
        %v214 = vld [vmem:[%s2] sm:$0xff]
        %216 = vset.pattern.permute.xlu0 0
        %217 = vperm.xlu0 %216, %v214
        %v218 = vpop.permute.xlu0 %217
        %v224 = vunpack.c.l.b16 %v210
        %v225 = vunpack.c.l.b16 %v211
        %v226 = vunpack.c.l.b16 %v212
        %v227 = vunpack.c.l.b16 %v213
        %v228 = vpack.c.b16 %v225, %v224
        %v229 = vpack.c.b16 %v227, %v226
        %vm232 = vcmask 261120
        %v234 = vsel %vm232, %v209, 0
        %236 = vmatpush.bf16.msra.mxu0 0
        %237 = vmatpush.bf16.msra.mxu0 0
        %238 = vmatpush.bf16.msra.mxu0 0
        %239 = vmatpush.bf16.msra.mxu0 0
        %240 = vmatpush.bf16.msra.mxu0 0
        %241 = vmatpush.bf16.msra.mxu0 0
        %242 = vmatpush.bf16.msra.mxu0 %v229
        %243 = vmatpush.bf16.msra.mxu0 %v228
        %244 = vmatmul.bf16.gmra.mxu0 %v234
        %v245 = vpop.f32.mrf.mxu0
        %v246 = vadd.f32 %v218, %v245
        %v247 = vpop.f32.mrf.mxu0
        %248 = vdwg.mxu0
        %v249 = vmax.f32 %v246, 0.0
        %250 = vst [vmem:[%s207] sm:$0xff] %v249
        %s251 = sand.u32 %s112, 1
        %s252 = scalar_lea.sflag [#allocation4], %s251
        %s253 = sand.u32 %s112, 1
        %s254 = smul.addr %s253, 8
        %s255 = scalar_lea.vmem [#allocation5], %s254
        // Predicated region
        $region37: #{tpu_custom_call.1} parent=31 // pred_check
          %p256 = pneg %p122
        $region38: #{tpu_custom_call.1} parent=31 // pred_check_branch
          %258 = sbr.rel (%p256) target = $region40
        $region39: #{tpu_custom_call.1} parent=31 // pred_region
          %260 = vsyncadd %s252, 0
          %s261 = smul.addr %s24, 4
          %s262 = sadd.s32 %s25, %s261
          %s263 = smul.addr %s262, 8
          %s264 = scalar_lea.hbm %s3, %s263
          %s266 = sshll.u32 %s255, 4
          %s267 = int_to_ptr.vmem [resolvable:$true] %s266
          %s268 = sshll.u32 %s264, 4
          %s269 = int_to_ptr.hbm [resolvable:$true] %s268
          %271 = dma.vmem_to_hbm [thread:$0]  %s267, 128, %s269, %s252
        $region40: #{tpu_custom_call.1} parent=31 // pred_fallthru
          _
      $region32: #{tpu_custom_call.1} parent=5 // pred_fallthru
        _
      %p272 = scmp.le.s32.totalorder 2, %s15
      // Predicated region
      $region41: #{tpu_custom_call.1} parent=5 // pred_check
        %p273 = pneg %p272
      $region42: #{tpu_custom_call.1} parent=5 // pred_check_branch
        %275 = sbr.rel (%p273) target = $region44
      $region43: #{tpu_custom_call.1} parent=5 // pred_region
        %s276 = ssub.s32 %s15, 2
        // Predicated region
        $region45: #{tpu_custom_call.1} parent=43 // pred_check
          %p277 = pneg %p128
        $region46: #{tpu_custom_call.1} parent=43 // pred_check_branch
          %279 = sbr.rel (%p277) target = $region48
        $region47: #{tpu_custom_call.1} parent=43 // pred_region
          %s280 = sand.u32 %s113, 1
          %s281 = scalar_lea.sflag [#allocation4], %s280
          %s282 = sand.u32 %s113, 1
          %s283 = smul.addr %s282, 8
          %s284 = scalar_lea.vmem [#allocation5], %s283
          %286 = dma.done %s281, 128
        $region48: #{tpu_custom_call.1} parent=43 // pred_fallthru
          _
      $region44: #{tpu_custom_call.1} parent=5 // pred_fallthru
        _
    $region6: #{tpu_custom_call.1} parent=1 // loop_footer
      %s19 = sadd.s32 1, %s15
    $region7: #{tpu_custom_call.1} parent=1 // loop_footer_branch
      %14 = sbr.rel target = $region3
    $region8: #{tpu_custom_call.1} parent=1 // loop_exit
      _
    %287 = vsyncpa [#allocation3], 1
    %s288 = scalar_lea.sflag [#allocation3], 1
    %289 = vsyncpa %s288, 1
    %290 = vsyncpa [#allocation4], 1
    %s291 = scalar_lea.sflag [#allocation4], 1
    %292 = vsyncpa %s291, 1

</llo_original>
